<compile_context>
chip_gen: v6e
topology: v6e:2x2x1
jax: 0.10.0
libtpu: 0.0.40
codegen_flags: <defaults>
</compile_context>

<pallas_src>
import jax
import jax.numpy as jnp
from jax.experimental import pallas as pl
from jax.experimental.pallas import tpu as pltpu


def gcn_kernel(a_ref, x_ref, w1_ref, b1_ref, w2_ref, b2_ref, w3_ref, b3_ref,
               o_ref):
    a = a_ref[...]                                            # bf16 (N, N)
    # conv1: A_hat @ (x @ W1) + b1, then ReLU  (f32 accumulation on MXU)
    h = jnp.dot(x_ref[...], w1_ref[...], preferred_element_type=jnp.float32)
    h = jnp.dot(a, h.astype(jnp.bfloat16),
                preferred_element_type=jnp.float32) + b1_ref[...]
    h = jnp.maximum(h, 0.0)
    # conv2: A_hat @ (h @ W2) + b2, then ReLU
    h = jnp.dot(h.astype(jnp.bfloat16), w2_ref[...],
                preferred_element_type=jnp.float32)
    h = jnp.dot(a, h.astype(jnp.bfloat16),
                preferred_element_type=jnp.float32) + b2_ref[...]
    h = jnp.maximum(h, 0.0)
    # linear: h @ W3 + b3
    o_ref[...] = jnp.dot(h.astype(jnp.bfloat16), w3_ref[...],
                         preferred_element_type=jnp.float32) + b3_ref[...]


def gcn_net_forward(x, a_hat, params):
    """x: (N, F) float32 node features; a_hat: (N, N) normalized adjacency."""
    w1, b1, w2, b2, w3, b3 = params
    n, f = x.shape
    hid = w1.shape[1]
    c = w3.shape[1]

    # bf16 MXU operands; biases stay f32 (added after f32 accumulation).
    a_bf = a_hat.astype(jnp.bfloat16)
    x_bf = x.astype(jnp.bfloat16)
    w1_bf = w1.astype(jnp.bfloat16)
    w2_bf = w2.astype(jnp.bfloat16)
    w3_bf = w3.astype(jnp.bfloat16)
    b1_2d = b1[None, :].astype(jnp.float32)
    b2_2d = b2[None, :].astype(jnp.float32)
    b3_2d = b3[None, :].astype(jnp.float32)

    flops = 2 * (n * f * hid + n * n * hid + n * hid * hid + n * n * hid
                 + n * hid * c)
    bytes_accessed = (
        2 * (a_bf.size + x_bf.size + w1_bf.size + w2_bf.size + w3_bf.size)
        + 4 * (b1_2d.size + b2_2d.size + b3_2d.size + n * c))

    vmem = pl.BlockSpec(memory_space=pltpu.MemorySpace.VMEM)
    out = pl.pallas_call(
        gcn_kernel,
        out_shape=jax.ShapeDtypeStruct((n, c), jnp.float32),
        in_specs=[vmem] * 8,
        out_specs=vmem,
        cost_estimate=pl.CostEstimate(flops=flops, transcendentals=0,
                                      bytes_accessed=bytes_accessed),
    )(a_bf, x_bf, w1_bf, b1_2d, w2_bf, b2_2d, w3_bf, b3_2d)
    return out


def build_normalized_adjacency(src, dst, num_nodes):
    """PyG GCNConv gcn_norm (add_self_loops=True, edge_weight=1)."""
    loop = jnp.arange(num_nodes, dtype=src.dtype)
    s = jnp.concatenate([src, loop])
    d = jnp.concatenate([dst, loop])
    w = jnp.ones(s.shape[0], jnp.float32)
    deg = jnp.zeros((num_nodes,), jnp.float32).at[d].add(w)
    dinv = jnp.where(deg > 0, jax.lax.rsqrt(deg), 0.0)
    norm = dinv[s] * w * dinv[d]
    a = jnp.zeros((num_nodes, num_nodes), jnp.float32).at[d, s].add(norm)
    return a


def reference_forward_f32(x, a_hat, params):
    w1, b1, w2, b2, w3, b3 = params
    h = jnp.maximum(a_hat @ (x @ w1) + b1, 0.0)
    h = jnp.maximum(a_hat @ (h @ w2) + b2, 0.0)
    return h @ w3 + b3


def reference_forward_bf16(x, a_hat, params):
    """Mirrors the kernel's mixed precision (bf16 MXU operands, f32 acc)."""
    w1, b1, w2, b2, w3, b3 = params
    bf = jnp.bfloat16

    def dot(lhs, rhs):
        return jnp.dot(lhs.astype(bf), rhs.astype(bf),
                       preferred_element_type=jnp.float32)

    a = a_hat.astype(bf)
    h = jnp.maximum(dot(a, dot(x, w1)) + b1, 0.0)
    h = jnp.maximum(dot(a, dot(h, w2)) + b2, 0.0)
    return dot(h, w3) + b3


if __name__ == "__main__":
    num_nodes = 10
    num_node_features = 4   # x is undefined in the source script; small choice
    hidden = 5
    num_classes = 7

    src = jnp.array(
        [0, 0, 0, 0, 0, 0, 0, 1, 1, 1, 1, 1, 1, 1, 2, 3, 4, 5, 6, 7, 8],
        dtype=jnp.int32)
    dst = jnp.array(
        [2, 3, 4, 5, 6, 7, 8, 2, 3, 4, 5, 6, 7, 8, 9, 9, 9, 9, 9, 9, 9],
        dtype=jnp.int32)
    a_hat = build_normalized_adjacency(src, dst, num_nodes)

    key = jax.random.PRNGKey(0)
    kx, k1, k2, k3, k4, k5, k6 = jax.random.split(key, 7)
    x = jax.random.normal(kx, (num_nodes, num_node_features), jnp.float32)
    w1 = 0.5 * jax.random.normal(k1, (num_node_features, hidden), jnp.float32)
    b1 = 0.1 * jax.random.normal(k2, (hidden,), jnp.float32)
    w2 = 0.5 * jax.random.normal(k3, (hidden, hidden), jnp.float32)
    b2 = 0.1 * jax.random.normal(k4, (hidden,), jnp.float32)
    w3 = 0.5 * jax.random.normal(k5, (hidden, num_classes), jnp.float32)
    b3 = 0.1 * jax.random.normal(k6, (num_classes,), jnp.float32)
    params = (w1, b1, w2, b2, w3, b3)

    out = gcn_net_forward(x, a_hat, params)
    out = jax.block_until_ready(out)
    assert out.shape == (num_nodes, num_classes)

    # Check against a reference using the same bf16/f32 mixed precision.
    ref_bf16 = reference_forward_bf16(x, a_hat, params)
    assert jnp.allclose(out, ref_bf16, atol=1e-3, rtol=1e-3), (
        jnp.max(jnp.abs(out - ref_bf16)))

    # Loose check against the pure-f32 module semantics (bf16 rounding noise).
    ref_f32 = reference_forward_f32(x, a_hat, params)
    assert jnp.allclose(out, ref_f32, atol=1e-1, rtol=1e-1), (
        jnp.max(jnp.abs(out - ref_f32)))

    print("KERNEL_OK")
</pallas_src>

<mosaic_0001>
module attributes {stable_mosaic.version = 11 : i64} {
  func.func @gcn_kernel(%arg0: memref<10x10xbf16, #tpu.memory_space<vmem>>, %arg1: memref<10x4xbf16, #tpu.memory_space<vmem>>, %arg2: memref<4x5xbf16, #tpu.memory_space<vmem>>, %arg3: memref<1x5xf32, #tpu.memory_space<vmem>>, %arg4: memref<5x5xbf16, #tpu.memory_space<vmem>>, %arg5: memref<1x5xf32, #tpu.memory_space<vmem>>, %arg6: memref<5x7xbf16, #tpu.memory_space<vmem>>, %arg7: memref<1x7xf32, #tpu.memory_space<vmem>>, %arg8: memref<10x7xf32, #tpu.memory_space<vmem>>) attributes {dimension_semantics = [], scalar_prefetch = 0 : i64, scratch_operands = 0 : i64, tpu.core_type = #tpu.core_type<tc>} {
    %c0 = arith.constant 0 : index
    %c0_0 = arith.constant 0 : index
    %0 = vector.load %arg0[%c0, %c0_0] : memref<10x10xbf16, #tpu.memory_space<vmem>>, vector<10x10xbf16>
    %c0_1 = arith.constant 0 : index
    %c0_2 = arith.constant 0 : index
    %1 = vector.load %arg1[%c0_1, %c0_2] : memref<10x4xbf16, #tpu.memory_space<vmem>>, vector<10x4xbf16>
    %c0_3 = arith.constant 0 : index
    %c0_4 = arith.constant 0 : index
    %2 = vector.load %arg2[%c0_3, %c0_4] : memref<4x5xbf16, #tpu.memory_space<vmem>>, vector<4x5xbf16>
    %cst = arith.constant dense<0.000000e+00> : vector<10x5xf32>
    %3 = tpu.matmul %1, %2, %cst {dimension_numbers = #tpu.dot_dimension_numbers<[1], [0], [0], [1], [0, 0, 1, 1], [], []>} : vector<10x4xbf16>, vector<4x5xbf16>, vector<10x5xf32> -> vector<10x5xf32>
    %4 = arith.truncf %3 : vector<10x5xf32> to vector<10x5xbf16>
    %cst_5 = arith.constant dense<0.000000e+00> : vector<10x5xf32>
    %5 = tpu.matmul %0, %4, %cst_5 {dimension_numbers = #tpu.dot_dimension_numbers<[1], [0], [0], [1], [0, 0, 1, 1], [], []>} : vector<10x10xbf16>, vector<10x5xbf16>, vector<10x5xf32> -> vector<10x5xf32>
    %c0_6 = arith.constant 0 : index
    %c0_7 = arith.constant 0 : index
    %6 = vector.load %arg3[%c0_6, %c0_7] : memref<1x5xf32, #tpu.memory_space<vmem>>, vector<1x5xf32>
    %7 = vector.broadcast %6 : vector<1x5xf32> to vector<10x5xf32>
    %8 = arith.addf %5, %7 : vector<10x5xf32>
    %cst_8 = arith.constant 0.000000e+00 : f32
    %9 = vector.broadcast %cst_8 : f32 to vector<10x5xf32>
    %10 = arith.maximumf %8, %9 : vector<10x5xf32>
    %11 = arith.truncf %10 : vector<10x5xf32> to vector<10x5xbf16>
    %c0_9 = arith.constant 0 : index
    %c0_10 = arith.constant 0 : index
    %12 = vector.load %arg4[%c0_9, %c0_10] : memref<5x5xbf16, #tpu.memory_space<vmem>>, vector<5x5xbf16>
    %cst_11 = arith.constant dense<0.000000e+00> : vector<10x5xf32>
    %13 = tpu.matmul %11, %12, %cst_11 {dimension_numbers = #tpu.dot_dimension_numbers<[1], [0], [0], [1], [0, 0, 1, 1], [], []>} : vector<10x5xbf16>, vector<5x5xbf16>, vector<10x5xf32> -> vector<10x5xf32>
    %14 = arith.truncf %13 : vector<10x5xf32> to vector<10x5xbf16>
    %cst_12 = arith.constant dense<0.000000e+00> : vector<10x5xf32>
    %15 = tpu.matmul %0, %14, %cst_12 {dimension_numbers = #tpu.dot_dimension_numbers<[1], [0], [0], [1], [0, 0, 1, 1], [], []>} : vector<10x10xbf16>, vector<10x5xbf16>, vector<10x5xf32> -> vector<10x5xf32>
    %c0_13 = arith.constant 0 : index
    %c0_14 = arith.constant 0 : index
    %16 = vector.load %arg5[%c0_13, %c0_14] : memref<1x5xf32, #tpu.memory_space<vmem>>, vector<1x5xf32>
    %17 = vector.broadcast %16 : vector<1x5xf32> to vector<10x5xf32>
    %18 = arith.addf %15, %17 : vector<10x5xf32>
    %cst_15 = arith.constant 0.000000e+00 : f32
    %19 = vector.broadcast %cst_15 : f32 to vector<10x5xf32>
    %20 = arith.maximumf %18, %19 : vector<10x5xf32>
    %21 = arith.truncf %20 : vector<10x5xf32> to vector<10x5xbf16>
    %c0_16 = arith.constant 0 : index
    %c0_17 = arith.constant 0 : index
    %22 = vector.load %arg6[%c0_16, %c0_17] : memref<5x7xbf16, #tpu.memory_space<vmem>>, vector<5x7xbf16>
    %cst_18 = arith.constant dense<0.000000e+00> : vector<10x7xf32>
    %23 = tpu.matmul %21, %22, %cst_18 {dimension_numbers = #tpu.dot_dimension_numbers<[1], [0], [0], [1], [0, 0, 1, 1], [], []>} : vector<10x5xbf16>, vector<5x7xbf16>, vector<10x7xf32> -> vector<10x7xf32>
    %c0_19 = arith.constant 0 : index
    %c0_20 = arith.constant 0 : index
    %24 = vector.load %arg7[%c0_19, %c0_20] : memref<1x7xf32, #tpu.memory_space<vmem>>, vector<1x7xf32>
    %25 = vector.broadcast %24 : vector<1x7xf32> to vector<10x7xf32>
    %26 = arith.addf %23, %25 : vector<10x7xf32>
    %c0_21 = arith.constant 0 : index
    %c0_22 = arith.constant 0 : index
    %27 = vector.load %arg8[%c0_21, %c0_22] : memref<10x7xf32, #tpu.memory_space<vmem>>, vector<10x7xf32>
    tpu.vector_store %arg8[%c0_21, %c0_22], %26 {strides = array<i32>} : memref<10x7xf32, #tpu.memory_space<vmem>>, vector<10x7xf32>,
    return
  }
}

</mosaic_0001>

<llo_original>
// kernel: tpu_custom_call.1
$region0: #{tpu_custom_call.1}
  #allocation0 [shape = 'u32[]', space=smem, size = 0x4, offset = 0x4, fixed_abs, tag = 'smem constant byte address 0x4 - core index']
  #allocation1 [shape = 'u32[144,128]{1,0:T(1,128)}', space=vmem, size = 0x12000, scoped, tag = 'internal scratch']
  %s0 = inlined_call_operand.vmem [shape: bf16[10,10], index: 0, kind: input, shape index: {}]
  %s1 = inlined_call_operand.vmem [shape: bf16[10,4], index: 1, kind: input, shape index: {}]
  %s2 = inlined_call_operand.hbm [shape: bf16[4,5], index: 2, kind: input, shape index: {}]
  %s3 = inlined_call_operand.vmem [shape: f32[1,5], index: 3, kind: input, shape index: {}]
  %s4 = inlined_call_operand.vmem [shape: bf16[5,5], index: 4, kind: input, shape index: {}]
  %s5 = inlined_call_operand.vmem [shape: f32[1,5], index: 5, kind: input, shape index: {}]
  %s6 = inlined_call_operand.vmem [shape: bf16[5,7], index: 6, kind: input, shape index: {}]
  %s7 = inlined_call_operand.vmem [shape: f32[1,7], index: 7, kind: input, shape index: {}]
  %s8 = inlined_call_operand.vmem [shape: f32[10,7], index: 8, kind: output, shape index: {}]
  %s9 = sld [smem:[#allocation0]]
  $region46: #{tpu_custom_call.1} parent=0
    _
  %s11 = ssub.s32 1, %s9
  %s12 = scalar_select 0, %s11, %s9
  $region1: #{tpu_custom_call.1} parent=0
    #allocation2 [shape = 'u8[1024]{0}', space=vmem, size = 0x400, scoped, tag = 'input window, operand 2, single buffered']
    #allocation3 [shape = 's32[1]{0}', space=sflag, size = 0x4, scoped, tag = 'scoped memory for tpu_custom_call.1']
    %13 = vsyncpa [#allocation3], 0
    // Predicated region
    $region2: #{tpu_custom_call.1} parent=1 // pred_check
      _
    $region3: #{tpu_custom_call.1} parent=1 // pred_check_branch
      %15 = sbr.rel (0) target = $region5
    $region4: #{tpu_custom_call.1} parent=1 // pred_region
      _
    $region5: #{tpu_custom_call.1} parent=1 // pred_fallthru
      _
    // Predicated region
    $region6: #{tpu_custom_call.1} parent=1 // pred_check
      _
    $region7: #{tpu_custom_call.1} parent=1 // pred_check_branch
      %17 = sbr.rel (0) target = $region9
    $region8: #{tpu_custom_call.1} parent=1 // pred_region
      _
    $region9: #{tpu_custom_call.1} parent=1 // pred_fallthru
      _
    // Predicated region
    $region10: #{tpu_custom_call.1} parent=1 // pred_check
      _
    $region11: #{tpu_custom_call.1} parent=1 // pred_check_branch
      %19 = sbr.rel (0) target = $region13
    $region12: #{tpu_custom_call.1} parent=1 // pred_region
      %s21 = ssub.s32 32, 32
      %22 = vsyncadd [#allocation3], %s21
      %s24 = sshll.u32 [#allocation2], 4
      %s25 = int_to_ptr.vmem [resolvable:$true] %s24
      %27 = dma.hbm_to_vmem [thread:$0]  %s2, 32, %s25, [#allocation3]
    $region13: #{tpu_custom_call.1} parent=1 // pred_fallthru
      _
    // Predicated region
    $region14: #{tpu_custom_call.1} parent=1 // pred_check
      _
    $region15: #{tpu_custom_call.1} parent=1 // pred_check_branch
      %29 = sbr.rel (0) target = $region17
    $region16: #{tpu_custom_call.1} parent=1 // pred_region
      _
    $region17: #{tpu_custom_call.1} parent=1 // pred_fallthru
      _
    // Predicated region
    $region18: #{tpu_custom_call.1} parent=1 // pred_check
      _
    $region19: #{tpu_custom_call.1} parent=1 // pred_check_branch
      %31 = sbr.rel (0) target = $region21
    $region20: #{tpu_custom_call.1} parent=1 // pred_region
      _
    $region21: #{tpu_custom_call.1} parent=1 // pred_fallthru
      _
    // Predicated region
    $region22: #{tpu_custom_call.1} parent=1 // pred_check
      _
    $region23: #{tpu_custom_call.1} parent=1 // pred_check_branch
      %33 = sbr.rel (0) target = $region25
    $region24: #{tpu_custom_call.1} parent=1 // pred_region
      _
    $region25: #{tpu_custom_call.1} parent=1 // pred_fallthru
      _
    // Predicated region
    $region26: #{tpu_custom_call.1} parent=1 // pred_check
      _
    $region27: #{tpu_custom_call.1} parent=1 // pred_check_branch
      %35 = sbr.rel (0) target = $region29
    $region28: #{tpu_custom_call.1} parent=1 // pred_region
      _
    $region29: #{tpu_custom_call.1} parent=1 // pred_fallthru
      _
    // Predicated region
    $region30: #{tpu_custom_call.1} parent=1 // pred_check
      _
    $region31: #{tpu_custom_call.1} parent=1 // pred_check_branch
      %37 = sbr.rel (0) target = $region33
    $region32: #{tpu_custom_call.1} parent=1 // pred_region
      _
    $region33: #{tpu_custom_call.1} parent=1 // pred_fallthru
      _
    // Predicated region
    $region34: #{tpu_custom_call.1} parent=1 // pred_check
      _
    $region35: #{tpu_custom_call.1} parent=1 // pred_check_branch
      %39 = sbr.rel (0) target = $region37
    $region36: #{tpu_custom_call.1} parent=1 // pred_region
      %40 = dma.done [#allocation3], 32
    $region37: #{tpu_custom_call.1} parent=1 // pred_fallthru
      _
    %v42 = vld [vmem:[%s0] sm:$0xf]
    %v43 = vld [vmem:[%s0 + $0x4] sm:$0x1]
    %v44 = vld [vmem:[%s1] sm:$0xf]
    %v45 = vld [vmem:[%s1 + $0x4] sm:$0x1]
    %v46 = vld [vmem:[#allocation2] sm:$0x3]
    %v49 = vunpack.c.l.b16 %v44
    %v50 = vunpack.c.l.b16 %v45
    %v51 = vpack.c.b16 %v50, %v49
    %vm52 = vcmask 31744
    %v54 = vsel %vm52, %v51, 0
    %vm56 = vcmask 1041408
    %v58 = vsel %vm56, %v46, 0
    %60 = vmatprep.subr.bf16.mxu0 0
    %61 = vmatpush1.bf16.msra.mxu0 0
    %62 = vmatprep.subr.bf16.mxu0 0
    %63 = vmatpush1.bf16.msra.mxu0 0
    %64 = vmatprep.subr.bf16.mxu0 0
    %65 = vmatpush1.bf16.msra.mxu0 0
    %66 = vmatprep.subr.bf16.mxu0 0
    %67 = vmatpush1.bf16.msra.mxu0 0
    %68 = vmatprep.subr.bf16.mxu0 0
    %69 = vmatpush1.bf16.msra.mxu0 0
    %70 = vmatprep.subr.bf16.mxu0 0
    %71 = vmatpush1.bf16.msra.mxu0 0
    %72 = vmatprep.subr.bf16.mxu0 0
    %73 = vmatpush1.bf16.msra.mxu0 0
    %74 = vmatprep.subr.bf16.mxu0 0
    %75 = vmatpush1.bf16.msra.mxu0 %v58
    %76 = vmatprep.subr.bf16.mxu0 0
    %77 = vmatpush2.bf16.msra.mxu0 0
    %78 = vmatprep.subr.bf16.mxu0 0
    %79 = vmatpush2.bf16.msra.mxu0 0
    %80 = vmatprep.subr.bf16.mxu0 0
    %81 = vmatpush2.bf16.msra.mxu0 0
    %82 = vmatprep.subr.bf16.mxu0 0
    %83 = vmatpush2.bf16.msra.mxu0 0
    %84 = vmatprep.subr.bf16.mxu0 0
    %85 = vmatpush2.bf16.msra.mxu0 0
    %86 = vmatprep.subr.bf16.mxu0 0
    %87 = vmatpush2.bf16.msra.mxu0 0
    %88 = vmatprep.subr.bf16.mxu0 0
    %89 = vmatpush2.bf16.msra.mxu0 0
    %90 = vmatprep.subr.bf16.mxu0 0
    %91 = vmatpush2.bf16.msra.mxu0 0
    %92 = vmatprep.mubr.bf16.mxu0 0
    %93 = vmatmul.mubr.bf16.gmra.mxu0 %v54
    %v94 = vpop.f32.mrf.mxu0
    %v95 = vadd.f32 0.0, %v94
    %v96 = vpop.f32.mrf.mxu0
    %v97 = vpop.f32.mrf.mxu0
    %v98 = vadd.f32 0.0, %v97
    %v99 = vpop.f32.mrf.mxu0
    %100 = vdwg.mxu0
    %v101 = vpack.c.bf16 %v98, %v95
    %v102 = vld [vmem:[%s3] sm:$0x1]
    %v104 = vlaneseq
    %v105 = vshrl.u32 %v104, 7
    %v106 = vsub.s32 0, %v105
    %v107 = vrot.slane %v102, %v106
    %v111 = vunpack.c.l.b16 %v42
    %v112 = vunpack.c.l.b16 %v43
    %v113 = vpack.c.b16 %v112, %v111
    %vm114 = vcmask 80896
    %v116 = vsel %vm114, %v113, 0
    %vm118 = vcmask 1044480
    %v120 = vsel %vm118, %v101, 0
    %122 = vmatprep.subr.bf16.mxu0 0
    %123 = vmatpush1.bf16.msra.mxu0 0
    %124 = vmatprep.subr.bf16.mxu0 0
    %125 = vmatpush1.bf16.msra.mxu0 0
    %126 = vmatprep.subr.bf16.mxu0 0
    %127 = vmatpush1.bf16.msra.mxu0 0
    %128 = vmatprep.subr.bf16.mxu0 0
    %129 = vmatpush1.bf16.msra.mxu0 0
    %130 = vmatprep.subr.bf16.mxu0 0
    %131 = vmatpush1.bf16.msra.mxu0 0
    %132 = vmatprep.subr.bf16.mxu0 0
    %133 = vmatpush1.bf16.msra.mxu0 0
    %134 = vmatprep.subr.bf16.mxu0 0
    %135 = vmatpush1.bf16.msra.mxu0 0
    %136 = vmatprep.subr.bf16.mxu0 0
    %137 = vmatpush1.bf16.msra.mxu0 %v120
    %138 = vmatprep.subr.bf16.mxu0 0
    %139 = vmatpush2.bf16.msra.mxu0 0
    %140 = vmatprep.subr.bf16.mxu0 0
    %141 = vmatpush2.bf16.msra.mxu0 0
    %142 = vmatprep.subr.bf16.mxu0 0
    %143 = vmatpush2.bf16.msra.mxu0 0
    %144 = vmatprep.subr.bf16.mxu0 0
    %145 = vmatpush2.bf16.msra.mxu0 0
    %146 = vmatprep.subr.bf16.mxu0 0
    %147 = vmatpush2.bf16.msra.mxu0 0
    %148 = vmatprep.subr.bf16.mxu0 0
    %149 = vmatpush2.bf16.msra.mxu0 0
    %150 = vmatprep.subr.bf16.mxu0 0
    %151 = vmatpush2.bf16.msra.mxu0 0
    %152 = vmatprep.subr.bf16.mxu0 0
    %153 = vmatpush2.bf16.msra.mxu0 0
    %154 = vmatprep.mubr.bf16.mxu0 0
    %155 = vmatmul.mubr.bf16.gmra.mxu0 %v116
    %v156 = vpop.f32.mrf.mxu0
    %v157 = vadd.f32 %v107, %v156
    %v158 = vpop.f32.mrf.mxu0
    %v159 = vpop.f32.mrf.mxu0
    %v160 = vadd.f32 %v107, %v159
    %v161 = vpop.f32.mrf.mxu0
    %162 = vdwg.mxu0
    %v163 = vmax.f32 %v157, 0.0
    %v164 = vmax.f32 %v160, 0.0
    %v165 = vpack.c.bf16 %v164, %v163
    %v166 = vld [vmem:[%s4] sm:$0x7]
    %vm167 = vcmask 39936
    %v169 = vsel %vm167, %v165, 0
    %vm171 = vcmask 1042432
    %v172 = vsel %vm56, 4294967295, 65535
    %v173 = vsel %vm171, %v172, 0
    %v175 = vand.u32 %v166, %v173
    %177 = vmatprep.subr.bf16.mxu0 0
    %178 = vmatpush1.bf16.msra.mxu0 0
    %179 = vmatprep.subr.bf16.mxu0 0
    %180 = vmatpush1.bf16.msra.mxu0 0
    %181 = vmatprep.subr.bf16.mxu0 0
    %182 = vmatpush1.bf16.msra.mxu0 0
    %183 = vmatprep.subr.bf16.mxu0 0
    %184 = vmatpush1.bf16.msra.mxu0 0
    %185 = vmatprep.subr.bf16.mxu0 0
    %186 = vmatpush1.bf16.msra.mxu0 0
    %187 = vmatprep.subr.bf16.mxu0 0
    %188 = vmatpush1.bf16.msra.mxu0 0
    %189 = vmatprep.subr.bf16.mxu0 0
    %190 = vmatpush1.bf16.msra.mxu0 0
    %191 = vmatprep.subr.bf16.mxu0 0
    %192 = vmatpush1.bf16.msra.mxu0 %v175
    %193 = vmatprep.subr.bf16.mxu0 0
    %194 = vmatpush2.bf16.msra.mxu0 0
    %195 = vmatprep.subr.bf16.mxu0 0
    %196 = vmatpush2.bf16.msra.mxu0 0
    %197 = vmatprep.subr.bf16.mxu0 0
    %198 = vmatpush2.bf16.msra.mxu0 0
    %199 = vmatprep.subr.bf16.mxu0 0
    %200 = vmatpush2.bf16.msra.mxu0 0
    %201 = vmatprep.subr.bf16.mxu0 0
    %202 = vmatpush2.bf16.msra.mxu0 0
    %203 = vmatprep.subr.bf16.mxu0 0
    %204 = vmatpush2.bf16.msra.mxu0 0
    %205 = vmatprep.subr.bf16.mxu0 0
    %206 = vmatpush2.bf16.msra.mxu0 0
    %207 = vmatprep.subr.bf16.mxu0 0
    %208 = vmatpush2.bf16.msra.mxu0 0
    %209 = vmatprep.mubr.bf16.mxu0 0
    %210 = vmatmul.mubr.bf16.gmra.mxu0 %v169
    %v211 = vpop.f32.mrf.mxu0
    %v212 = vadd.f32 0.0, %v211
    %v213 = vpop.f32.mrf.mxu0
    %v214 = vpop.f32.mrf.mxu0
    %v215 = vadd.f32 0.0, %v214
    %v216 = vpop.f32.mrf.mxu0
    %217 = vdwg.mxu0
    %v218 = vpack.c.bf16 %v215, %v212
    %v219 = vld [vmem:[%s5] sm:$0x1]
    %v221 = vlaneseq
    %v222 = vshrl.u32 %v221, 7
    %v223 = vsub.s32 0, %v222
    %v224 = vrot.slane %v219, %v223
    %v227 = vsel %vm118, %v218, 0
    %229 = vmatprep.subr.bf16.mxu0 0
    %230 = vmatpush1.bf16.msra.mxu0 0
    %231 = vmatprep.subr.bf16.mxu0 0
    %232 = vmatpush1.bf16.msra.mxu0 0
    %233 = vmatprep.subr.bf16.mxu0 0
    %234 = vmatpush1.bf16.msra.mxu0 0
    %235 = vmatprep.subr.bf16.mxu0 0
    %236 = vmatpush1.bf16.msra.mxu0 0
    %237 = vmatprep.subr.bf16.mxu0 0
    %238 = vmatpush1.bf16.msra.mxu0 0
    %239 = vmatprep.subr.bf16.mxu0 0
    %240 = vmatpush1.bf16.msra.mxu0 0
    %241 = vmatprep.subr.bf16.mxu0 0
    %242 = vmatpush1.bf16.msra.mxu0 0
    %243 = vmatprep.subr.bf16.mxu0 0
    %244 = vmatpush1.bf16.msra.mxu0 %v227
    %245 = vmatprep.subr.bf16.mxu0 0
    %246 = vmatpush2.bf16.msra.mxu0 0
    %247 = vmatprep.subr.bf16.mxu0 0
    %248 = vmatpush2.bf16.msra.mxu0 0
    %249 = vmatprep.subr.bf16.mxu0 0
    %250 = vmatpush2.bf16.msra.mxu0 0
    %251 = vmatprep.subr.bf16.mxu0 0
    %252 = vmatpush2.bf16.msra.mxu0 0
    %253 = vmatprep.subr.bf16.mxu0 0
    %254 = vmatpush2.bf16.msra.mxu0 0
    %255 = vmatprep.subr.bf16.mxu0 0
    %256 = vmatpush2.bf16.msra.mxu0 0
    %257 = vmatprep.subr.bf16.mxu0 0
    %258 = vmatpush2.bf16.msra.mxu0 0
    %259 = vmatprep.subr.bf16.mxu0 0
    %260 = vmatpush2.bf16.msra.mxu0 0
    %261 = vmatprep.mubr.bf16.mxu0 0
    %262 = vmatmul.mubr.bf16.gmra.mxu0 %v116
    %v263 = vpop.f32.mrf.mxu0
    %v264 = vadd.f32 %v224, %v263
    %v265 = vpop.f32.mrf.mxu0
    %v266 = vpop.f32.mrf.mxu0
    %v267 = vadd.f32 %v224, %v266
    %v268 = vpop.f32.mrf.mxu0
    %269 = vdwg.mxu0
    %v270 = vmax.f32 %v264, 0.0
    %v271 = vmax.f32 %v267, 0.0
    %v272 = vpack.c.bf16 %v271, %v270
    %v273 = vld [vmem:[%s6] sm:$0x7]
    %v274 = vld [vmem:[%s7] sm:$0x1]
    %v276 = vlaneseq
    %v277 = vshrl.u32 %v276, 7
    %v278 = vsub.s32 0, %v277
    %v279 = vrot.slane %v274, %v278
    %v282 = vsel %vm167, %v272, 0
    %v285 = vand.u32 %v273, %v173
    %287 = vmatprep.subr.bf16.mxu0 0
    %288 = vmatpush1.bf16.msra.mxu0 0
    %289 = vmatprep.subr.bf16.mxu0 0
    %290 = vmatpush1.bf16.msra.mxu0 0
    %291 = vmatprep.subr.bf16.mxu0 0
    %292 = vmatpush1.bf16.msra.mxu0 0
    %293 = vmatprep.subr.bf16.mxu0 0
    %294 = vmatpush1.bf16.msra.mxu0 0
    %295 = vmatprep.subr.bf16.mxu0 0
    %296 = vmatpush1.bf16.msra.mxu0 0
    %297 = vmatprep.subr.bf16.mxu0 0
    %298 = vmatpush1.bf16.msra.mxu0 0
    %299 = vmatprep.subr.bf16.mxu0 0
    %300 = vmatpush1.bf16.msra.mxu0 0
    %301 = vmatprep.subr.bf16.mxu0 0
    %302 = vmatpush1.bf16.msra.mxu0 %v285
    %303 = vmatprep.subr.bf16.mxu0 0
    %304 = vmatpush2.bf16.msra.mxu0 0
    %305 = vmatprep.subr.bf16.mxu0 0
    %306 = vmatpush2.bf16.msra.mxu0 0
    %307 = vmatprep.subr.bf16.mxu0 0
    %308 = vmatpush2.bf16.msra.mxu0 0
    %309 = vmatprep.subr.bf16.mxu0 0
    %310 = vmatpush2.bf16.msra.mxu0 0
    %311 = vmatprep.subr.bf16.mxu0 0
    %312 = vmatpush2.bf16.msra.mxu0 0
    %313 = vmatprep.subr.bf16.mxu0 0
    %314 = vmatpush2.bf16.msra.mxu0 0
    %315 = vmatprep.subr.bf16.mxu0 0
    %316 = vmatpush2.bf16.msra.mxu0 0
    %317 = vmatprep.subr.bf16.mxu0 0
    %318 = vmatpush2.bf16.msra.mxu0 0
    %319 = vmatprep.mubr.bf16.mxu0 0
    %320 = vmatmul.mubr.bf16.gmra.mxu0 %v282
    %v321 = vpop.f32.mrf.mxu0
    %v322 = vadd.f32 %v279, %v321
    %v323 = vpop.f32.mrf.mxu0
    %v324 = vpop.f32.mrf.mxu0
    %v325 = vadd.f32 %v279, %v324
    %v326 = vpop.f32.mrf.mxu0
    %327 = vdwg.mxu0
    %vm328 = vcmask 56320
    %329 = vst.msk [vmem:[%s8] sm:$0xff] %vm328, %v322
    %vm330 = vcmask 50176
    %331 = vst.msk [vmem:[%s8 + $0x8] sm:$0x3] %vm330, %v325
    // Predicated region
    $region38: #{tpu_custom_call.1} parent=1 // pred_check
      _
    $region39: #{tpu_custom_call.1} parent=1 // pred_check_branch
      %333 = sbr.rel (0) target = $region41
    $region40: #{tpu_custom_call.1} parent=1 // pred_region
      _
    $region41: #{tpu_custom_call.1} parent=1 // pred_fallthru
      _
    // Predicated region
    $region42: #{tpu_custom_call.1} parent=1 // pred_check
      _
    $region43: #{tpu_custom_call.1} parent=1 // pred_check_branch
      %335 = sbr.rel (0) target = $region45
    $region44: #{tpu_custom_call.1} parent=1 // pred_region
      _
    $region45: #{tpu_custom_call.1} parent=1 // pred_fallthru
      _
    %336 = vsyncpa [#allocation3], 1

</llo_original>
